<compile_context>
chip_gen: v6e
topology: v6e:2x2x1
jax: 0.10.0
libtpu: 0.0.40
codegen_flags: <defaults>
</compile_context>

<pallas_src>
import functools

import jax
import jax.numpy as jnp
from jax.experimental import pallas as pl
from jax.experimental.pallas import tpu as pltpu

_LANE = 128     # vreg lane width
_SUBLANE = 8    # vreg sublane count (f32)


def _round_up(v, m):
    return ((v + m - 1) // m) * m


def _mlp_kernel(x_ref, w1_ref, b1_ref, w2_ref, b2_ref, w3_ref, b3_ref, o_ref):
    # In-kernel cast of the streamed activations (f32 HBM read, bf16 compute).
    x = x_ref[...].astype(w1_ref.dtype)

    # --- layer 1: Linear(d_in, 128) + ReLU ------------------------------------
    h = jnp.dot(x, w1_ref[...], preferred_element_type=jnp.float32)
    h = jnp.maximum(h + b1_ref[...], 0.0)        # bias broadcast (1, 128), f32
    # Dropout(0.3): identity in eval mode.

    # --- layer 2: Linear(128, 64) + ReLU --------------------------------------
    h = jnp.dot(h.astype(w2_ref.dtype), w2_ref[...],
                preferred_element_type=jnp.float32)
    h = jnp.maximum(h + b2_ref[...], 0.0)
    # Dropout(0.2): identity in eval mode.

    # --- layer 3: Linear(64, num_classes) --------------------------------------
    out = jnp.dot(h.astype(w3_ref.dtype), w3_ref[...],
                  preferred_element_type=jnp.float32)
    o_ref[...] = (out + b3_ref[...]).astype(o_ref.dtype)


@functools.partial(jax.jit, static_argnames=("block_b",))
def pose_classifier_forward(x, w1, b1, w2, b2, w3, b3, *, block_b=1024):
    """x: (B, input_size) f32.

    w*: (in, out) in the compute dtype (use prepare_params), b*: (1, out) f32.
    Returns (B, num_classes) f32 logits (eval-mode forward, dropout = identity).
    """
    B, d_in = x.shape
    n_cls = w3.shape[1]

    # Batch tile: large for throughput, but capped at ~half the batch (rounded
    # to a sublane multiple) so there are always >= 2 grid steps when B > 8
    # (v7x megacore) and last-tile waste stays small.
    tile_b = max(_SUBLANE, min(block_b, _round_up(pl.cdiv(B, 2), _SUBLANE)))
    grid = (pl.cdiv(B, tile_b),)   # ragged last block handled by Pallas

    return pl.pallas_call(
        _mlp_kernel,
        out_shape=jax.ShapeDtypeStruct((B, n_cls), jnp.float32),
        grid_spec=pltpu.PrefetchScalarGridSpec(
            num_scalar_prefetch=0,
            grid=grid,
            in_specs=[
                # Streaming batch tile of raw f32 activations. Last dim equals
                # the full array dim, so the (tile_b, d_in) block is legal even
                # though d_in is not a multiple of 128.
                pl.BlockSpec((tile_b, d_in), lambda i: (i, 0)),
                # Weights / biases: full arrays, same block every grid step
                # (kept resident in VMEM across the whole grid).
                pl.BlockSpec(w1.shape, lambda i: (0, 0)),
                pl.BlockSpec(b1.shape, lambda i: (0, 0)),
                pl.BlockSpec(w2.shape, lambda i: (0, 0)),
                pl.BlockSpec(b2.shape, lambda i: (0, 0)),
                pl.BlockSpec(w3.shape, lambda i: (0, 0)),
                pl.BlockSpec(b3.shape, lambda i: (0, 0)),
            ],
            # Narrow output: last dim equals the full array dim (num_classes),
            # so no 128-lane padding and ~16x less HBM writeback.
            out_specs=pl.BlockSpec((tile_b, n_cls), lambda i: (i, 0)),
        ),
        compiler_params=pltpu.CompilerParams(
            dimension_semantics=("parallel",),
        ),
    )(x, w1, b1, w2, b2, w3, b3)


def prepare_params(w1, b1, w2, b2, w3, b3, compute_dtype=jnp.bfloat16):
    """One-time parameter prep (hoisted out of the per-call path).

    Casts weights to the compute dtype (bf16 by default) and biases to f32
    (1, out) rows. Call once and reuse the result for every forward call.
    """
    def prep(w, b):
        return (jnp.asarray(w, compute_dtype),
                jnp.asarray(b, jnp.float32).reshape(1, -1))

    w1, b1 = prep(w1, b1)
    w2, b2 = prep(w2, b2)
    w3, b3 = prep(w3, b3)
    return w1, b1, w2, b2, w3, b3


def init_params(key, input_size, num_classes):
    """Deterministic synthetic params (uniform, roughly PyTorch-scaled), f32."""
    ks = jax.random.split(key, 6)

    def lin(kw, kb, fan_in, fan_out):
        bound = 1.0 / jnp.sqrt(fan_in)
        # stored as (in, out) == PyTorch weight.T
        w = jax.random.uniform(kw, (fan_in, fan_out), jnp.float32, -bound, bound)
        b = jax.random.uniform(kb, (1, fan_out), jnp.float32, -bound, bound)
        return w, b

    w1, b1 = lin(ks[0], ks[1], input_size, 128)
    w2, b2 = lin(ks[2], ks[3], 128, 64)
    w3, b3 = lin(ks[4], ks[5], 64, num_classes)
    return w1, b1, w2, b2, w3, b3


def reference_forward(x, w1, b1, w2, b2, w3, b3):
    h = jnp.maximum(x @ w1 + b1, 0.0)
    h = jnp.maximum(h @ w2 + b2, 0.0)
    return h @ w3 + b3


if __name__ == "__main__":
    input_size = 66      # e.g. 33 pose keypoints x (x, y)
    num_classes = 8
    batch = 32           # small demo batch

    key = jax.random.PRNGKey(0)
    k_x, k_p = jax.random.split(key)
    x = jax.random.normal(k_x, (batch, input_size), dtype=jnp.float32)
    params_f32 = init_params(k_p, input_size, num_classes)

    # One-time weight prep (bf16 weights, f32 bias rows) outside the hot path.
    params = prepare_params(*params_f32)

    out = pose_classifier_forward(x, *params)
    out = jax.block_until_ready(out)

    ref = reference_forward(x, *params_f32)
    assert out.shape == (batch, num_classes)
    # bf16 weights + in-kernel bf16 cast of x (f32 accumulation) -> ~1e-2 rel tol.
    assert jnp.allclose(out, ref, atol=5e-2, rtol=5e-2), "mismatch vs reference"

    print("KERNEL_OK")
</pallas_src>

<mosaic_0001>
module attributes {stable_mosaic.version = 11 : i64} {
  func.func @_mlp_kernel(%arg0: i32, %arg1: memref<16x66xf32, #tpu.memory_space<vmem>>, %arg2: memref<66x128xbf16, #tpu.memory_space<vmem>>, %arg3: memref<1x128xf32, #tpu.memory_space<vmem>>, %arg4: memref<128x64xbf16, #tpu.memory_space<vmem>>, %arg5: memref<1x64xf32, #tpu.memory_space<vmem>>, %arg6: memref<64x8xbf16, #tpu.memory_space<vmem>>, %arg7: memref<1x8xf32, #tpu.memory_space<vmem>>, %arg8: memref<16x8xf32, #tpu.memory_space<vmem>>) attributes {dimension_semantics = [#tpu.dimension_semantics<parallel>], iteration_bounds = array<i64: 2>, scalar_prefetch = 0 : i64, scratch_operands = 0 : i64, tpu.core_type = #tpu.core_type<tc>, window_params = [{transform_indices = @transform_0, window_bounds = array<i64: 16, 66>}, {pipeline_mode = #tpu.pipeline_mode<synchronous>, transform_indices = @transform_1, window_bounds = array<i64: 66, 128>}, {pipeline_mode = #tpu.pipeline_mode<synchronous>, transform_indices = @transform_2, window_bounds = array<i64: 1, 128>}, {pipeline_mode = #tpu.pipeline_mode<synchronous>, transform_indices = @transform_3, window_bounds = array<i64: 128, 64>}, {pipeline_mode = #tpu.pipeline_mode<synchronous>, transform_indices = @transform_4, window_bounds = array<i64: 1, 64>}, {pipeline_mode = #tpu.pipeline_mode<synchronous>, transform_indices = @transform_5, window_bounds = array<i64: 64, 8>}, {pipeline_mode = #tpu.pipeline_mode<synchronous>, transform_indices = @transform_6, window_bounds = array<i64: 1, 8>}, {transform_indices = @transform_7, window_bounds = array<i64: 16, 8>}]} {
    %c0 = arith.constant 0 : index
    %c0_0 = arith.constant 0 : index
    %0 = vector.load %arg1[%c0, %c0_0] : memref<16x66xf32, #tpu.memory_space<vmem>>, vector<16x66xf32>
    %1 = arith.truncf %0 : vector<16x66xf32> to vector<16x66xbf16>
    %c0_1 = arith.constant 0 : index
    %c0_2 = arith.constant 0 : index
    %2 = vector.load %arg2[%c0_1, %c0_2] : memref<66x128xbf16, #tpu.memory_space<vmem>>, vector<66x128xbf16>
    %cst = arith.constant dense<0.000000e+00> : vector<16x128xf32>
    %3 = tpu.matmul %1, %2, %cst {dimension_numbers = #tpu.dot_dimension_numbers<[1], [0], [0], [1], [0, 0, 1, 1], [], []>} : vector<16x66xbf16>, vector<66x128xbf16>, vector<16x128xf32> -> vector<16x128xf32>
    %c0_3 = arith.constant 0 : index
    %c0_4 = arith.constant 0 : index
    %4 = vector.load %arg3[%c0_3, %c0_4] : memref<1x128xf32, #tpu.memory_space<vmem>>, vector<1x128xf32>
    %5 = vector.broadcast %4 : vector<1x128xf32> to vector<16x128xf32>
    %6 = arith.addf %3, %5 : vector<16x128xf32>
    %cst_5 = arith.constant 0.000000e+00 : f32
    %7 = vector.broadcast %cst_5 : f32 to vector<16x128xf32>
    %8 = arith.maximumf %6, %7 : vector<16x128xf32>
    %9 = arith.truncf %8 : vector<16x128xf32> to vector<16x128xbf16>
    %c0_6 = arith.constant 0 : index
    %c0_7 = arith.constant 0 : index
    %10 = vector.load %arg4[%c0_6, %c0_7] : memref<128x64xbf16, #tpu.memory_space<vmem>>, vector<128x64xbf16>
    %cst_8 = arith.constant dense<0.000000e+00> : vector<16x64xf32>
    %11 = tpu.matmul %9, %10, %cst_8 {dimension_numbers = #tpu.dot_dimension_numbers<[1], [0], [0], [1], [0, 0, 1, 1], [], []>} : vector<16x128xbf16>, vector<128x64xbf16>, vector<16x64xf32> -> vector<16x64xf32>
    %c0_9 = arith.constant 0 : index
    %c0_10 = arith.constant 0 : index
    %12 = vector.load %arg5[%c0_9, %c0_10] : memref<1x64xf32, #tpu.memory_space<vmem>>, vector<1x64xf32>
    %13 = vector.broadcast %12 : vector<1x64xf32> to vector<16x64xf32>
    %14 = arith.addf %11, %13 : vector<16x64xf32>
    %cst_11 = arith.constant 0.000000e+00 : f32
    %15 = vector.broadcast %cst_11 : f32 to vector<16x64xf32>
    %16 = arith.maximumf %14, %15 : vector<16x64xf32>
    %17 = arith.truncf %16 : vector<16x64xf32> to vector<16x64xbf16>
    %c0_12 = arith.constant 0 : index
    %c0_13 = arith.constant 0 : index
    %18 = vector.load %arg6[%c0_12, %c0_13] : memref<64x8xbf16, #tpu.memory_space<vmem>>, vector<64x8xbf16>
    %cst_14 = arith.constant dense<0.000000e+00> : vector<16x8xf32>
    %19 = tpu.matmul %17, %18, %cst_14 {dimension_numbers = #tpu.dot_dimension_numbers<[1], [0], [0], [1], [0, 0, 1, 1], [], []>} : vector<16x64xbf16>, vector<64x8xbf16>, vector<16x8xf32> -> vector<16x8xf32>
    %c0_15 = arith.constant 0 : index
    %c0_16 = arith.constant 0 : index
    %20 = vector.load %arg7[%c0_15, %c0_16] : memref<1x8xf32, #tpu.memory_space<vmem>>, vector<1x8xf32>
    %21 = vector.broadcast %20 : vector<1x8xf32> to vector<16x8xf32>
    %22 = arith.addf %19, %21 : vector<16x8xf32>
    %c0_17 = arith.constant 0 : index
    %c0_18 = arith.constant 0 : index
    %23 = vector.load %arg8[%c0_17, %c0_18] : memref<16x8xf32, #tpu.memory_space<vmem>>, vector<16x8xf32>
    tpu.vector_store %arg8[%c0_17, %c0_18], %22 {strides = array<i32>} : memref<16x8xf32, #tpu.memory_space<vmem>>, vector<16x8xf32>,
    return
  }
  func.func @transform_0(%arg0: i32) -> (i32, i32) {
    %c0_i32 = arith.constant 0 : i32
    %c0_i32_0 = arith.constant 0 : i32
    return %arg0, %c0_i32 : i32, i32
  }
  func.func @transform_1(%arg0: i32) -> (i32, i32) {
    %c0_i32 = arith.constant 0 : i32
    %c0_i32_0 = arith.constant 0 : i32
    %c0_i32_1 = arith.constant 0 : i32
    return %c0_i32, %c0_i32_0 : i32, i32
  }
  func.func @transform_2(%arg0: i32) -> (i32, i32) {
    %c0_i32 = arith.constant 0 : i32
    %c0_i32_0 = arith.constant 0 : i32
    %c0_i32_1 = arith.constant 0 : i32
    return %c0_i32, %c0_i32_0 : i32, i32
  }
  func.func @transform_3(%arg0: i32) -> (i32, i32) {
    %c0_i32 = arith.constant 0 : i32
    %c0_i32_0 = arith.constant 0 : i32
    %c0_i32_1 = arith.constant 0 : i32
    return %c0_i32, %c0_i32_0 : i32, i32
  }
  func.func @transform_4(%arg0: i32) -> (i32, i32) {
    %c0_i32 = arith.constant 0 : i32
    %c0_i32_0 = arith.constant 0 : i32
    %c0_i32_1 = arith.constant 0 : i32
    return %c0_i32, %c0_i32_0 : i32, i32
  }
  func.func @transform_5(%arg0: i32) -> (i32, i32) {
    %c0_i32 = arith.constant 0 : i32
    %c0_i32_0 = arith.constant 0 : i32
    %c0_i32_1 = arith.constant 0 : i32
    return %c0_i32, %c0_i32_0 : i32, i32
  }
  func.func @transform_6(%arg0: i32) -> (i32, i32) {
    %c0_i32 = arith.constant 0 : i32
    %c0_i32_0 = arith.constant 0 : i32
    %c0_i32_1 = arith.constant 0 : i32
    return %c0_i32, %c0_i32_0 : i32, i32
  }
  func.func @transform_7(%arg0: i32) -> (i32, i32) {
    %c0_i32 = arith.constant 0 : i32
    %c0_i32_0 = arith.constant 0 : i32
    return %arg0, %c0_i32 : i32, i32
  }
}

</mosaic_0001>

<llo_original>
// kernel: pose_classifier_forward.1
$region0: #{pose_classifier_forward.1}
  #allocation0 [shape = 'u32[]', space=smem, size = 0x4, offset = 0x4, fixed_abs, tag = 'smem constant byte address 0x4 - core index']
  #allocation1 [shape = 'u32[144,128]{1,0:T(1,128)}', space=vmem, size = 0x12000, scoped, tag = 'internal scratch']
  %s0 = inlined_call_operand.vmem [shape: f32[32,66], index: 0, kind: input, shape index: {}]
  %s1 = inlined_call_operand.vmem [shape: bf16[66,128], index: 1, kind: input, shape index: {}]
  %s2 = inlined_call_operand.vmem [shape: f32[1,128], index: 2, kind: input, shape index: {}]
  %s3 = inlined_call_operand.vmem [shape: bf16[128,64], index: 3, kind: input, shape index: {}]
  %s4 = inlined_call_operand.vmem [shape: f32[1,64], index: 4, kind: input, shape index: {}]
  %s5 = inlined_call_operand.vmem [shape: bf16[64,8], index: 5, kind: input, shape index: {}]
  %s6 = inlined_call_operand.vmem [shape: f32[1,8], index: 6, kind: input, shape index: {}]
  %s7 = inlined_call_operand.vmem [shape: f32[32,8], index: 7, kind: output, shape index: {}]
  %s8 = sld [smem:[#allocation0]]
  $region61: #{pose_classifier_forward.1} parent=0
    _
  %s10 = ssub.s32 1, %s8
  %s11 = scalar_select 0, %s10, %s8
  loop: start=0, step=1, limit=4
  $region2: #{pose_classifier_forward.1} parent=0 // loop_pre_header
    _
  $region3: #{pose_classifier_forward.1} parent=0 // loop_header
    %s13 = sphi 0, %s17
    %p14 = scmp.ge.s32.totalorder %s13, 4
    %s23 = sphi 0, %s25
    %s26 = sphi 0, %s23
    %s27 = sphi 0, %s26
    %s43 = sphi 0, %s27
    %s47 = sphi 0, %s47
    %s49 = sphi 0, %s47
    %s50 = sphi 0, %s49
    %s64 = sphi 0, %s50
    %s68 = sphi 0, %s68
    %s70 = sphi 0, %s68
    %s71 = sphi 0, %s70
    %s85 = sphi 0, %s71
    %s89 = sphi 0, %s89
    %s91 = sphi 0, %s89
    %s92 = sphi 0, %s91
    %s106 = sphi 0, %s92
    %s110 = sphi 0, %s110
    %s112 = sphi 0, %s110
    %s113 = sphi 0, %s112
    %s127 = sphi 0, %s113
    %s131 = sphi 0, %s131
    %s133 = sphi 0, %s131
    %s134 = sphi 0, %s133
    %s148 = sphi 0, %s134
    %s152 = sphi 0, %s152
    %s154 = sphi 0, %s152
    %s155 = sphi 0, %s154
    %s169 = sphi 0, %s155
    %s175 = sphi 0, %s177
    %s178 = sphi 0, %s175
    %s179 = sphi 0, %s178
    %s195 = sphi 0, %s179
  $region4: #{pose_classifier_forward.1} parent=0 // loop_header_branch
    %16 = sbr.rel (%p14) target = $region8
  $region5: #{pose_classifier_forward.1} parent=0 // loop_body
    %s18 = ssub.s32 %s13, 1
    %s19 = ssub.s32 %s13, 2
    %s20 = sadd.s32 %s13, 1
    %s21 = ssub.s32 %s13, %s20
    %p22 = scmp.eq.s32.totalorder %s21, 0
    %s24 = sadd.s32 %s23, 1
    %s25 = scalar_select %p22, %s23, %s24
    %p28 = pneg %p22
    %p29 = scmp.eq.s32.totalorder %s13, 1
    %p30 = por %p28, %p29
    %p31 = scmp.ne.s32.totalorder %s23, %s26
    %p32 = scmp.eq.s32.totalorder %s13, 0
    %p33 = por %p31, %p32
    %p34 = scmp.ne.s32.totalorder %s23, %s26
    %p35 = scmp.eq.s32.totalorder %s18, 1
    %p36 = por %p34, %p35
    %p37 = scmp.ne.s32.totalorder %s26, %s27
    %p38 = scmp.eq.s32.totalorder %s18, 0
    %p39 = por %p37, %p38
    %p40 = scmp.ne.s32.totalorder %s26, %s27
    %p41 = scmp.eq.s32.totalorder %s19, 1
    %p42 = por %p40, %p41
    %p44 = scmp.ne.s32.totalorder %s27, %s43
    %p45 = scmp.eq.s32.totalorder %s19, 0
    %p46 = por %p44, %p45
    %s48 = sadd.s32 %s47, 1
    %p51 = scmp.eq.s32.totalorder %s13, 1
    %p52 = scmp.ne.s32.totalorder %s47, %s49
    %p53 = scmp.eq.s32.totalorder %s13, 0
    %p54 = por %p52, %p53
    %p55 = scmp.ne.s32.totalorder %s47, %s49
    %p56 = scmp.eq.s32.totalorder %s18, 1
    %p57 = por %p55, %p56
    %p58 = scmp.ne.s32.totalorder %s49, %s50
    %p59 = scmp.eq.s32.totalorder %s18, 0
    %p60 = por %p58, %p59
    %p61 = scmp.ne.s32.totalorder %s49, %s50
    %p62 = scmp.eq.s32.totalorder %s19, 1
    %p63 = por %p61, %p62
    %p65 = scmp.ne.s32.totalorder %s50, %s64
    %p66 = scmp.eq.s32.totalorder %s19, 0
    %p67 = por %p65, %p66
    %s69 = sadd.s32 %s68, 1
    %p72 = scmp.eq.s32.totalorder %s13, 1
    %p73 = scmp.ne.s32.totalorder %s68, %s70
    %p74 = scmp.eq.s32.totalorder %s13, 0
    %p75 = por %p73, %p74
    %p76 = scmp.ne.s32.totalorder %s68, %s70
    %p77 = scmp.eq.s32.totalorder %s18, 1
    %p78 = por %p76, %p77
    %p79 = scmp.ne.s32.totalorder %s70, %s71
    %p80 = scmp.eq.s32.totalorder %s18, 0
    %p81 = por %p79, %p80
    %p82 = scmp.ne.s32.totalorder %s70, %s71
    %p83 = scmp.eq.s32.totalorder %s19, 1
    %p84 = por %p82, %p83
    %p86 = scmp.ne.s32.totalorder %s71, %s85
    %p87 = scmp.eq.s32.totalorder %s19, 0
    %p88 = por %p86, %p87
    %s90 = sadd.s32 %s89, 1
    %p93 = scmp.eq.s32.totalorder %s13, 1
    %p94 = scmp.ne.s32.totalorder %s89, %s91
    %p95 = scmp.eq.s32.totalorder %s13, 0
    %p96 = por %p94, %p95
    %p97 = scmp.ne.s32.totalorder %s89, %s91
    %p98 = scmp.eq.s32.totalorder %s18, 1
    %p99 = por %p97, %p98
    %p100 = scmp.ne.s32.totalorder %s91, %s92
    %p101 = scmp.eq.s32.totalorder %s18, 0
    %p102 = por %p100, %p101
    %p103 = scmp.ne.s32.totalorder %s91, %s92
    %p104 = scmp.eq.s32.totalorder %s19, 1
    %p105 = por %p103, %p104
    %p107 = scmp.ne.s32.totalorder %s92, %s106
    %p108 = scmp.eq.s32.totalorder %s19, 0
    %p109 = por %p107, %p108
    %s111 = sadd.s32 %s110, 1
    %p114 = scmp.eq.s32.totalorder %s13, 1
    %p115 = scmp.ne.s32.totalorder %s110, %s112
    %p116 = scmp.eq.s32.totalorder %s13, 0
    %p117 = por %p115, %p116
    %p118 = scmp.ne.s32.totalorder %s110, %s112
    %p119 = scmp.eq.s32.totalorder %s18, 1
    %p120 = por %p118, %p119
    %p121 = scmp.ne.s32.totalorder %s112, %s113
    %p122 = scmp.eq.s32.totalorder %s18, 0
    %p123 = por %p121, %p122
    %p124 = scmp.ne.s32.totalorder %s112, %s113
    %p125 = scmp.eq.s32.totalorder %s19, 1
    %p126 = por %p124, %p125
    %p128 = scmp.ne.s32.totalorder %s113, %s127
    %p129 = scmp.eq.s32.totalorder %s19, 0
    %p130 = por %p128, %p129
    %s132 = sadd.s32 %s131, 1
    %p135 = scmp.eq.s32.totalorder %s13, 1
    %p136 = scmp.ne.s32.totalorder %s131, %s133
    %p137 = scmp.eq.s32.totalorder %s13, 0
    %p138 = por %p136, %p137
    %p139 = scmp.ne.s32.totalorder %s131, %s133
    %p140 = scmp.eq.s32.totalorder %s18, 1
    %p141 = por %p139, %p140
    %p142 = scmp.ne.s32.totalorder %s133, %s134
    %p143 = scmp.eq.s32.totalorder %s18, 0
    %p144 = por %p142, %p143
    %p145 = scmp.ne.s32.totalorder %s133, %s134
    %p146 = scmp.eq.s32.totalorder %s19, 1
    %p147 = por %p145, %p146
    %p149 = scmp.ne.s32.totalorder %s134, %s148
    %p150 = scmp.eq.s32.totalorder %s19, 0
    %p151 = por %p149, %p150
    %s153 = sadd.s32 %s152, 1
    %p156 = scmp.eq.s32.totalorder %s13, 1
    %p157 = scmp.ne.s32.totalorder %s152, %s154
    %p158 = scmp.eq.s32.totalorder %s13, 0
    %p159 = por %p157, %p158
    %p160 = scmp.ne.s32.totalorder %s152, %s154
    %p161 = scmp.eq.s32.totalorder %s18, 1
    %p162 = por %p160, %p161
    %p163 = scmp.ne.s32.totalorder %s154, %s155
    %p164 = scmp.eq.s32.totalorder %s18, 0
    %p165 = por %p163, %p164
    %p166 = scmp.ne.s32.totalorder %s154, %s155
    %p167 = scmp.eq.s32.totalorder %s19, 1
    %p168 = por %p166, %p167
    %p170 = scmp.ne.s32.totalorder %s155, %s169
    %p171 = scmp.eq.s32.totalorder %s19, 0
    %p172 = por %p170, %p171
    %s173 = ssub.s32 %s13, %s20
    %p174 = scmp.eq.s32.totalorder %s173, 0
    %s176 = sadd.s32 %s175, 1
    %s177 = scalar_select %p174, %s175, %s176
    %p180 = pneg %p174
    %p181 = scmp.eq.s32.totalorder %s13, 1
    %p182 = por %p180, %p181
    %p183 = scmp.ne.s32.totalorder %s175, %s178
    %p184 = scmp.eq.s32.totalorder %s13, 0
    %p185 = por %p183, %p184
    %p186 = scmp.ne.s32.totalorder %s175, %s178
    %p187 = scmp.eq.s32.totalorder %s18, 1
    %p188 = por %p186, %p187
    %p189 = scmp.ne.s32.totalorder %s178, %s179
    %p190 = scmp.eq.s32.totalorder %s18, 0
    %p191 = por %p189, %p190
    %p192 = scmp.ne.s32.totalorder %s178, %s179
    %p193 = scmp.eq.s32.totalorder %s19, 1
    %p194 = por %p192, %p193
    %p196 = scmp.ne.s32.totalorder %s179, %s195
    %p197 = scmp.eq.s32.totalorder %s19, 0
    %p198 = por %p196, %p197
    %p199 = scmp.le.s32.totalorder 1, %s13
    %p200 = scmp.lt.s32.totalorder %s13, 3
    %p201 = pnand %p199, %p200
    %p202 = pneg %p201
    // Predicated region
    $region9: #{pose_classifier_forward.1} parent=5 // pred_check
      _
    $region10: #{pose_classifier_forward.1} parent=5 // pred_check_branch
      %204 = sbr.rel (%p201) target = $region12
    $region11: #{pose_classifier_forward.1} parent=5 // pred_region
      %s205 = ssub.s32 %s13, 1
      // Predicated region
      $region13: #{pose_classifier_forward.1} parent=11 // pred_check
        %p206 = pneg %p60
      $region14: #{pose_classifier_forward.1} parent=11 // pred_check_branch
        %208 = sbr.rel (%p206) target = $region16
      $region15: #{pose_classifier_forward.1} parent=11 // pred_region
        _
      $region16: #{pose_classifier_forward.1} parent=11 // pred_fallthru
        _
      // Predicated region
      $region17: #{pose_classifier_forward.1} parent=11 // pred_check
        %p209 = pneg %p81
      $region18: #{pose_classifier_forward.1} parent=11 // pred_check_branch
        %211 = sbr.rel (%p209) target = $region20
      $region19: #{pose_classifier_forward.1} parent=11 // pred_region
        _
      $region20: #{pose_classifier_forward.1} parent=11 // pred_fallthru
        _
      // Predicated region
      $region21: #{pose_classifier_forward.1} parent=11 // pred_check
        %p212 = pneg %p102
      $region22: #{pose_classifier_forward.1} parent=11 // pred_check_branch
        %214 = sbr.rel (%p212) target = $region24
      $region23: #{pose_classifier_forward.1} parent=11 // pred_region
        _
      $region24: #{pose_classifier_forward.1} parent=11 // pred_fallthru
        _
      // Predicated region
      $region25: #{pose_classifier_forward.1} parent=11 // pred_check
        %p215 = pneg %p123
      $region26: #{pose_classifier_forward.1} parent=11 // pred_check_branch
        %217 = sbr.rel (%p215) target = $region28
      $region27: #{pose_classifier_forward.1} parent=11 // pred_region
        _
      $region28: #{pose_classifier_forward.1} parent=11 // pred_fallthru
        _
      // Predicated region
      $region29: #{pose_classifier_forward.1} parent=11 // pred_check
        %p218 = pneg %p144
      $region30: #{pose_classifier_forward.1} parent=11 // pred_check_branch
        %220 = sbr.rel (%p218) target = $region32
      $region31: #{pose_classifier_forward.1} parent=11 // pred_region
        _
      $region32: #{pose_classifier_forward.1} parent=11 // pred_fallthru
        _
      // Predicated region
      $region33: #{pose_classifier_forward.1} parent=11 // pred_check
        %p221 = pneg %p165
      $region34: #{pose_classifier_forward.1} parent=11 // pred_check_branch
        %223 = sbr.rel (%p221) target = $region36
      $region35: #{pose_classifier_forward.1} parent=11 // pred_region
        _
      $region36: #{pose_classifier_forward.1} parent=11 // pred_fallthru
        _
    $region12: #{pose_classifier_forward.1} parent=5 // pred_fallthru
      _
    %p224 = scmp.lt.s32.totalorder %s13, 2
    // Predicated region
    $region37: #{pose_classifier_forward.1} parent=5 // pred_check
      %p225 = pneg %p224
    $region38: #{pose_classifier_forward.1} parent=5 // pred_check_branch
      %227 = sbr.rel (%p225) target = $region40
    $region39: #{pose_classifier_forward.1} parent=5 // pred_region
      // Predicated region
      $region41: #{pose_classifier_forward.1} parent=39 // pred_check
        %p228 = pneg %p33
      $region42: #{pose_classifier_forward.1} parent=39 // pred_check_branch
        %230 = sbr.rel (%p228) target = $region44
      $region43: #{pose_classifier_forward.1} parent=39 // pred_region
        %s231 = smul.u32 2, %s13
        %p232 = scmp.lt.s32.totalorder %s231, 3
        %s233 = scalar_select %p232, %s231, 3
        %s234 = smul.addr %s233, 8
        %s235 = scalar_lea.vmem %s0, %s234
        %s236 = smul.u32 2, %s13
      $region44: #{pose_classifier_forward.1} parent=39 // pred_fallthru
        _
    $region40: #{pose_classifier_forward.1} parent=5 // pred_fallthru
      _
    %p237 = scmp.le.s32.totalorder 1, %s13
    %p238 = scmp.lt.s32.totalorder %s13, 3
    %p239 = pnand %p237, %p238
    %p240 = pneg %p239
    // Predicated region
    $region45: #{pose_classifier_forward.1} parent=5 // pred_check
      _
    $region46: #{pose_classifier_forward.1} parent=5 // pred_check_branch
      %242 = sbr.rel (%p239) target = $region48
    $region47: #{pose_classifier_forward.1} parent=5 // pred_region
      %s243 = ssub.s32 %s13, 1
      %s244 = smul.u32 2, %s18
      %p245 = scmp.lt.s32.totalorder %s244, 3
      %s246 = scalar_select %p245, %s244, 3
      %s247 = smul.addr %s246, 8
      %s248 = scalar_lea.vmem %s0, %s247
      %p249 = pneg %p39
      %p250 = pneg %p36
      %p251 = pneg %p60
      %p252 = pneg %p57
      %p253 = pneg %p81
      %p254 = pneg %p78
      %p255 = pneg %p102
      %p256 = pneg %p99
      %p257 = pneg %p123
      %p258 = pneg %p120
      %p259 = pneg %p144
      %p260 = pneg %p141
      %p261 = pneg %p165
      %p262 = pneg %p162
      %p263 = pneg %p191
      %p264 = pneg %p188
      %s265 = smul.u32 2, %s18
      %p266 = scmp.lt.s32.totalorder %s265, 3
      %s267 = scalar_select %p266, %s265, 3
      %s268 = smul.addr %s267, 8
      %s269 = scalar_lea.vmem %s7, %s268
      %s270 = smul.u32 2, %s18
      %p271 = scmp.lt.s32.totalorder %s270, 3
      %s272 = scalar_select %p271, %s270, 3
      %s273 = smul.addr %s272, 8
      %s274 = scalar_lea.vmem %s0, %s273
      %s275 = smul.u32 2, %s18
      %s276 = smul.u32 2, %s18
      %p277 = scmp.lt.s32.totalorder %s276, 3
      %s278 = scalar_select %p277, %s276, 3
      %s279 = smul.addr %s278, 8
      %s280 = scalar_lea.vmem %s7, %s279
      %s281 = smul.u32 2, %s18
      %v283 = vld [vmem:[%s274] sm:$0xff]
      %v284 = vld [vmem:[%s274 + $0x8] sm:$0xff]
      %v285 = vpack.c.bf16 %v284, %v283
      %v286 = vld [vmem:[%s1] sm:$0xf]
      %v287 = vld [vmem:[%s1 + $0x4] sm:$0xf]
      %v288 = vld [vmem:[%s1 + $0x8] sm:$0xf]
      %v289 = vld [vmem:[%s1 + $0xc] sm:$0xf]
      %v290 = vld [vmem:[%s1 + $0x10] sm:$0xf]
      %v291 = vld [vmem:[%s1 + $0x14] sm:$0xf]
      %v292 = vld [vmem:[%s1 + $0x18] sm:$0xf]
      %v293 = vld [vmem:[%s1 + $0x1c] sm:$0xf]
      %v294 = vld [vmem:[%s1 + $0x20] sm:$0x1]
      %v295 = vld [vmem:[%s2] sm:$0x1]
      %v297 = vlaneseq
      %v298 = vshrl.u32 %v297, 7
      %v299 = vsub.s32 0, %v298
      %v300 = vrot.slane %v295, %v299
      %v311 = vunpack.c.l.b16 %v286
      %v312 = vunpack.c.l.b16 %v287
      %v313 = vunpack.c.l.b16 %v288
      %v314 = vunpack.c.l.b16 %v289
      %v315 = vunpack.c.l.b16 %v290
      %v316 = vunpack.c.l.b16 %v291
      %v317 = vunpack.c.l.b16 %v292
      %v318 = vunpack.c.l.b16 %v293
      %v319 = vunpack.c.l.b16 %v294
      %v320 = vpack.c.b16 %v312, %v311
      %v321 = vpack.c.b16 %v314, %v313
      %v322 = vpack.c.b16 %v316, %v315
      %v323 = vpack.c.b16 %v318, %v317
      %v324 = vpack.c.b16 %v319, %v319
      %vm329 = vcmask 539648
      %v331 = vsel %vm329, %v285, 0
      %vm333 = vcmask 1040384
      %v335 = vsel %vm333, %v324, 0
      %337 = vmatprep.subr.bf16.mxu0 0
      %338 = vmatpush1.bf16.msra.mxu0 0
      %339 = vmatprep.subr.bf16.mxu0 0
      %340 = vmatpush1.bf16.msra.mxu0 0
      %341 = vmatprep.subr.bf16.mxu0 0
      %342 = vmatpush1.bf16.msra.mxu0 0
      %343 = vmatprep.subr.bf16.mxu0 0
      %344 = vmatpush1.bf16.msra.mxu0 %v335
      %345 = vmatprep.subr.bf16.mxu0 0
      %346 = vmatpush1.bf16.msra.mxu0 %v323
      %347 = vmatprep.subr.bf16.mxu0 0
      %348 = vmatpush1.bf16.msra.mxu0 %v322
      %349 = vmatprep.subr.bf16.mxu0 0
      %350 = vmatpush1.bf16.msra.mxu0 %v321
      %351 = vmatprep.subr.bf16.mxu0 0
      %352 = vmatpush1.bf16.msra.mxu0 %v320
      %353 = vmatprep.subr.bf16.mxu0 0
      %354 = vmatpush2.bf16.msra.mxu0 0
      %355 = vmatprep.subr.bf16.mxu0 0
      %356 = vmatpush2.bf16.msra.mxu0 0
      %357 = vmatprep.subr.bf16.mxu0 0
      %358 = vmatpush2.bf16.msra.mxu0 0
      %359 = vmatprep.subr.bf16.mxu0 0
      %360 = vmatpush2.bf16.msra.mxu0 0
      %361 = vmatprep.subr.bf16.mxu0 0
      %362 = vmatpush2.bf16.msra.mxu0 0
      %363 = vmatprep.subr.bf16.mxu0 0
      %364 = vmatpush2.bf16.msra.mxu0 0
      %365 = vmatprep.subr.bf16.mxu0 0
      %366 = vmatpush2.bf16.msra.mxu0 0
      %367 = vmatprep.subr.bf16.mxu0 0
      %368 = vmatpush2.bf16.msra.mxu0 0
      %369 = vmatprep.mubr.bf16.mxu0 0
      %370 = vmatmul.mubr.bf16.gmra.mxu0 %v331
      %v371 = vpop.f32.mrf.mxu0
      %v372 = vadd.f32 %v300, %v371
      %v373 = vpop.f32.mrf.mxu0
      %v374 = vpop.f32.mrf.mxu0
      %v375 = vadd.f32 %v300, %v374
      %v376 = vpop.f32.mrf.mxu0
      %377 = vdwg.mxu0
      %v378 = vmax.f32 %v372, 0.0
      %v379 = vmax.f32 %v375, 0.0
      %v380 = vpack.c.bf16 %v379, %v378
      %v381 = vld [vmem:[%s3] sm:$0xf]
      %v382 = vld [vmem:[%s3 + $0x4] sm:$0xf]
      %v383 = vld [vmem:[%s3 + $0x8] sm:$0xf]
      %v384 = vld [vmem:[%s3 + $0xc] sm:$0xf]
      %v385 = vld [vmem:[%s3 + $0x10] sm:$0xf]
      %v386 = vld [vmem:[%s3 + $0x14] sm:$0xf]
      %v387 = vld [vmem:[%s3 + $0x18] sm:$0xf]
      %v388 = vld [vmem:[%s3 + $0x1c] sm:$0xf]
      %v389 = vld [vmem:[%s3 + $0x20] sm:$0xf]
      %v390 = vld [vmem:[%s3 + $0x24] sm:$0xf]
      %v391 = vld [vmem:[%s3 + $0x28] sm:$0xf]
      %v392 = vld [vmem:[%s3 + $0x2c] sm:$0xf]
      %v393 = vld [vmem:[%s3 + $0x30] sm:$0xf]
      %v394 = vld [vmem:[%s3 + $0x34] sm:$0xf]
      %v395 = vld [vmem:[%s3 + $0x38] sm:$0xf]
      %v396 = vld [vmem:[%s3 + $0x3c] sm:$0xf]
      %v397 = vld [vmem:[%s4] sm:$0x1]
      %v399 = vlaneseq
      %v400 = vshrl.u32 %v399, 7
      %v401 = vsub.s32 0, %v400
      %v402 = vrot.slane %v397, %v401
      %v420 = vunpack.c.l.b16 %v381
      %v421 = vunpack.c.l.b16 %v382
      %v422 = vunpack.c.l.b16 %v383
      %v423 = vunpack.c.l.b16 %v384
      %v424 = vunpack.c.l.b16 %v385
      %v425 = vunpack.c.l.b16 %v386
      %v426 = vunpack.c.l.b16 %v387
      %v427 = vunpack.c.l.b16 %v388
      %v428 = vunpack.c.l.b16 %v389
      %v429 = vunpack.c.l.b16 %v390
      %v430 = vunpack.c.l.b16 %v391
      %v431 = vunpack.c.l.b16 %v392
      %v432 = vunpack.c.l.b16 %v393
      %v433 = vunpack.c.l.b16 %v394
      %v434 = vunpack.c.l.b16 %v395
      %v435 = vunpack.c.l.b16 %v396
      %v436 = vpack.c.b16 %v421, %v420
      %v437 = vpack.c.b16 %v423, %v422
      %v438 = vpack.c.b16 %v425, %v424
      %v439 = vpack.c.b16 %v427, %v426
      %v440 = vpack.c.b16 %v429, %v428
      %v441 = vpack.c.b16 %v431, %v430
      %v442 = vpack.c.b16 %v433, %v432
      %v443 = vpack.c.b16 %v435, %v434
      %452 = vmatprep.subr.bf16.mxu0 0
      %453 = vmatpush1.bf16.msra.mxu0 %v443
      %454 = vmatprep.subr.bf16.mxu0 0
      %455 = vmatpush1.bf16.msra.mxu0 %v442
      %456 = vmatprep.subr.bf16.mxu0 0
      %457 = vmatpush1.bf16.msra.mxu0 %v441
      %458 = vmatprep.subr.bf16.mxu0 0
      %459 = vmatpush1.bf16.msra.mxu0 %v440
      %460 = vmatprep.subr.bf16.mxu0 0
      %461 = vmatpush1.bf16.msra.mxu0 %v439
      %462 = vmatprep.subr.bf16.mxu0 0
      %463 = vmatpush1.bf16.msra.mxu0 %v438
      %464 = vmatprep.subr.bf16.mxu0 0
      %465 = vmatpush1.bf16.msra.mxu0 %v437
      %466 = vmatprep.subr.bf16.mxu0 0
      %467 = vmatpush1.bf16.msra.mxu0 %v436
      %468 = vmatprep.subr.bf16.mxu0 0
      %469 = vmatpush2.bf16.msra.mxu0 0
      %470 = vmatprep.subr.bf16.mxu0 0
      %471 = vmatpush2.bf16.msra.mxu0 0
      %472 = vmatprep.subr.bf16.mxu0 0
      %473 = vmatpush2.bf16.msra.mxu0 0
      %474 = vmatprep.subr.bf16.mxu0 0
      %475 = vmatpush2.bf16.msra.mxu0 0
      %476 = vmatprep.subr.bf16.mxu0 0
      %477 = vmatpush2.bf16.msra.mxu0 0
      %478 = vmatprep.subr.bf16.mxu0 0
      %479 = vmatpush2.bf16.msra.mxu0 0
      %480 = vmatprep.subr.bf16.mxu0 0
      %481 = vmatpush2.bf16.msra.mxu0 0
      %482 = vmatprep.subr.bf16.mxu0 0
      %483 = vmatpush2.bf16.msra.mxu0 0
      %484 = vmatprep.mubr.bf16.mxu0 0
      %485 = vmatmul.mubr.bf16.gmra.mxu0 %v380
      %v486 = vpop.f32.mrf.mxu0
      %v487 = vadd.f32 %v402, %v486
      %v488 = vpop.f32.mrf.mxu0
      %v489 = vpop.f32.mrf.mxu0
      %v490 = vadd.f32 %v402, %v489
      %v491 = vpop.f32.mrf.mxu0
      %492 = vdwg.mxu0
      %v493 = vmax.f32 %v487, 0.0
      %v494 = vmax.f32 %v490, 0.0
      %v495 = vpack.c.bf16 %v494, %v493
      %v496 = vld [vmem:[%s5] sm:$0xf]
      %v497 = vld [vmem:[%s5 + $0x4] sm:$0xf]
      %v498 = vld [vmem:[%s5 + $0x8] sm:$0xf]
      %v499 = vld [vmem:[%s5 + $0xc] sm:$0xf]
      %v500 = vld [vmem:[%s5 + $0x10] sm:$0xf]
      %v501 = vld [vmem:[%s5 + $0x14] sm:$0xf]
      %v502 = vld [vmem:[%s5 + $0x18] sm:$0xf]
      %v503 = vld [vmem:[%s5 + $0x1c] sm:$0xf]
      %v504 = vld [vmem:[%s6] sm:$0x1]
      %v506 = vlaneseq
      %v507 = vshrl.u32 %v506, 7
      %v508 = vsub.s32 0, %v507
      %v509 = vrot.slane %v504, %v508
      %v519 = vunpack.c.l.b16 %v496
      %v520 = vunpack.c.l.b16 %v497
      %v521 = vunpack.c.l.b16 %v498
      %v522 = vunpack.c.l.b16 %v499
      %v523 = vunpack.c.l.b16 %v500
      %v524 = vunpack.c.l.b16 %v501
      %v525 = vunpack.c.l.b16 %v502
      %v526 = vunpack.c.l.b16 %v503
      %v527 = vpack.c.b16 %v520, %v519
      %v528 = vpack.c.b16 %v522, %v521
      %v529 = vpack.c.b16 %v524, %v523
      %v530 = vpack.c.b16 %v526, %v525
      %vm535 = vcmask 523264
      %v537 = vsel %vm535, %v495, 0
      %539 = vmatprep.subr.bf16.mxu0 0
      %540 = vmatpush1.bf16.msra.mxu0 0
      %541 = vmatprep.subr.bf16.mxu0 0
      %542 = vmatpush1.bf16.msra.mxu0 0
      %543 = vmatprep.subr.bf16.mxu0 0
      %544 = vmatpush1.bf16.msra.mxu0 0
      %545 = vmatprep.subr.bf16.mxu0 0
      %546 = vmatpush1.bf16.msra.mxu0 0
      %547 = vmatprep.subr.bf16.mxu0 0
      %548 = vmatpush1.bf16.msra.mxu0 %v530
      %549 = vmatprep.subr.bf16.mxu0 0
      %550 = vmatpush1.bf16.msra.mxu0 %v529
      %551 = vmatprep.subr.bf16.mxu0 0
      %552 = vmatpush1.bf16.msra.mxu0 %v528
      %553 = vmatprep.subr.bf16.mxu0 0
      %554 = vmatpush1.bf16.msra.mxu0 %v527
      %555 = vmatprep.subr.bf16.mxu0 0
      %556 = vmatpush2.bf16.msra.mxu0 0
      %557 = vmatprep.subr.bf16.mxu0 0
      %558 = vmatpush2.bf16.msra.mxu0 0
      %559 = vmatprep.subr.bf16.mxu0 0
      %560 = vmatpush2.bf16.msra.mxu0 0
      %561 = vmatprep.subr.bf16.mxu0 0
      %562 = vmatpush2.bf16.msra.mxu0 0
      %563 = vmatprep.subr.bf16.mxu0 0
      %564 = vmatpush2.bf16.msra.mxu0 0
      %565 = vmatprep.subr.bf16.mxu0 0
      %566 = vmatpush2.bf16.msra.mxu0 0
      %567 = vmatprep.subr.bf16.mxu0 0
      %568 = vmatpush2.bf16.msra.mxu0 0
      %569 = vmatprep.subr.bf16.mxu0 0
      %570 = vmatpush2.bf16.msra.mxu0 0
      %571 = vmatprep.mubr.bf16.mxu0 0
      %572 = vmatmul.mubr.bf16.gmra.mxu0 %v537
      %v573 = vpop.f32.mrf.mxu0
      %v574 = vadd.f32 %v509, %v573
      %v575 = vpop.f32.mrf.mxu0
      %v576 = vpop.f32.mrf.mxu0
      %v577 = vadd.f32 %v509, %v576
      %v578 = vpop.f32.mrf.mxu0
      %579 = vdwg.mxu0
      %vm580 = vcmask 64512
      %581 = vst.msk [vmem:[%s280] sm:$0xff] %vm580, %v574
      %582 = vst.msk [vmem:[%s280 + $0x8] sm:$0xff] %vm580, %v577
      %s583 = smul.u32 2, %s18
      %p584 = scmp.lt.s32.totalorder %s583, 3
      %s585 = scalar_select %p584, %s583, 3
      %s586 = smul.addr %s585, 8
      %s587 = scalar_lea.vmem %s7, %s586
      // Predicated region
      $region49: #{pose_classifier_forward.1} parent=47 // pred_check
        %p588 = pneg %p188
      $region50: #{pose_classifier_forward.1} parent=47 // pred_check_branch
        %590 = sbr.rel (%p588) target = $region52
      $region51: #{pose_classifier_forward.1} parent=47 // pred_region
        %s591 = smul.u32 2, %s18
      $region52: #{pose_classifier_forward.1} parent=47 // pred_fallthru
        _
    $region48: #{pose_classifier_forward.1} parent=5 // pred_fallthru
      _
    %p592 = scmp.le.s32.totalorder 2, %s13
    // Predicated region
    $region53: #{pose_classifier_forward.1} parent=5 // pred_check
      %p593 = pneg %p592
    $region54: #{pose_classifier_forward.1} parent=5 // pred_check_branch
      %595 = sbr.rel (%p593) target = $region56
    $region55: #{pose_classifier_forward.1} parent=5 // pred_region
      %s596 = ssub.s32 %s13, 2
      // Predicated region
      $region57: #{pose_classifier_forward.1} parent=55 // pred_check
        %p597 = pneg %p194
      $region58: #{pose_classifier_forward.1} parent=55 // pred_check_branch
        %599 = sbr.rel (%p597) target = $region60
      $region59: #{pose_classifier_forward.1} parent=55 // pred_region
        %s600 = smul.u32 2, %s19
        %p601 = scmp.lt.s32.totalorder %s600, 3
        %s602 = scalar_select %p601, %s600, 3
        %s603 = smul.addr %s602, 8
        %s604 = scalar_lea.vmem %s7, %s603
      $region60: #{pose_classifier_forward.1} parent=55 // pred_fallthru
        _
    $region56: #{pose_classifier_forward.1} parent=5 // pred_fallthru
      _
  $region6: #{pose_classifier_forward.1} parent=0 // loop_footer
    %s17 = sadd.s32 1, %s13
  $region7: #{pose_classifier_forward.1} parent=0 // loop_footer_branch
    %12 = sbr.rel target = $region3
  $region8: #{pose_classifier_forward.1} parent=0 // loop_exit
    _

</llo_original>
